<compile_context>
chip_gen: v5e
topology: v5e:2x2
jax: 0.10.0
libtpu: 0.0.40
codegen_flags: <defaults>
</compile_context>

<pallas_src>
import jax
import jax.numpy as jnp
from jax import lax
from jax.experimental import pallas as pl
from jax.experimental.pallas import tpu as pltpu


def _masked_transform_kernel(x_ref, m_ref, o_ref):
    """Tile kernel: x_ref (TB, F) lane-dense, m_ref (TB, 1) per-row mask."""
    x = x_ref[...]
    sel = m_ref[...] != 0               # (TB, 1) -> broadcasts over lanes
    # TODO(synk): Transform.transform() is abstract in the PyTorch source;
    # using a deterministic placeholder elementwise transform (negation).
    o_ref[...] = jnp.where(sel, -x, x)  # single store, no pl.when branch


def apply_transform(x, mask):
    """Masked per-image transform over the batch, lane-dense tiled."""
    B, C, H, W = x.shape
    F = C * H * W
    xf = x.reshape(B, F)

    LANE = 128
    F_pad = ((F + LANE - 1) // LANE) * LANE

    # Row-tile size: target ~4 MiB tiles (4x with double-buffered in+out stays
    # comfortably under v7x's 64 MiB physical VMEM and the raised scoped limit).
    row_bytes = F_pad * jnp.dtype(x.dtype).itemsize
    target_bytes = 4 * 1024 * 1024
    tb = max(1, min(B, target_bytes // max(row_bytes, 1)))
    if tb < B:
        tb = max(8, (tb // 8) * 8)      # keep sublane-aligned block height
    B_pad = ((B + tb - 1) // tb) * tb

    if F_pad != F or B_pad != B:
        xf = jnp.pad(xf, ((0, B_pad - B), (0, F_pad - F)))
    mask2 = jnp.pad(mask.astype(jnp.int32), (0, B_pad - B)).reshape(B_pad, 1)

    out = pl.pallas_call(
        _masked_transform_kernel,
        out_shape=jax.ShapeDtypeStruct((B_pad, F_pad), x.dtype),
        grid=(B_pad // tb,),
        in_specs=[
            pl.BlockSpec((tb, F_pad), lambda i: (i, 0)),
            pl.BlockSpec((tb, 1), lambda i: (i, 0)),
        ],
        out_specs=pl.BlockSpec((tb, F_pad), lambda i: (i, 0)),
        compiler_params=pltpu.CompilerParams(
            dimension_semantics=("parallel",),       # independent rows -> both TCs on v7x
            vmem_limit_bytes=64 * 1024 * 1024,       # keep dbl-buffered IO resident on v5e
        ),
    )(xf, mask2)

    return out[:B, :F].reshape(B, C, H, W)


def transform_forward(inputs, *, key, p=0.5, batch=False, training=True):
    """Functional mirror of Transform.forward (inplace=False semantics)."""
    if not (0.0 <= p <= 1.0):
        raise ValueError("Probability of rotation should be between 0 and 1")
    if not training:
        return inputs                     # no-op during inference

    B = inputs.shape[0]
    if batch:
        applied = jax.random.uniform(key) < p
        ones = jnp.ones((B,), jnp.int32)
        # Short-circuit the not-applied path at runtime: no HBM pass at all.
        return lax.cond(applied,
                        lambda a: apply_transform(a, ones),
                        lambda a: a,
                        inputs)
    else:
        n_sel = int(B * p)                # torch: randperm(B)[:int(B*p)]
        if n_sel == 0:
            return inputs                 # nothing selected -> skip kernel entirely
        perm = jax.random.permutation(key, B)
        indices = perm[:n_sel]
        mask = jnp.zeros((B,), jnp.int32).at[indices].set(1)
        return apply_transform(inputs, mask)


if __name__ == "__main__":
    key = jax.random.PRNGKey(0)
    k_x, k_t = jax.random.split(key)

    # Small NCHW input consistent with an image-preprocessing transform.
    x = jax.random.normal(k_x, (2, 4, 16, 16), jnp.float32)

    p = 0.5
    out = transform_forward(x, key=k_t, p=p, batch=False, training=True)
    out = jax.block_until_ready(out)

    # Pure-JAX reference for the same random selection.
    n_sel = int(x.shape[0] * p)
    perm = jax.random.permutation(k_t, x.shape[0])
    mask = jnp.zeros((x.shape[0],), jnp.int32).at[perm[:n_sel]].set(1)
    ref = jnp.where(mask[:, None, None, None] == 1, -x, x)
    assert out.shape == x.shape and out.dtype == x.dtype
    assert jnp.allclose(out, ref), "kernel mismatch vs reference (batch=False)"

    # batch=True path: either whole batch transformed or untouched.
    out_b = jax.block_until_ready(
        transform_forward(x, key=k_t, p=p, batch=True, training=True))
    applied = bool(jax.random.uniform(k_t) < p)
    ref_b = -x if applied else x
    assert jnp.allclose(out_b, ref_b), "kernel mismatch vs reference (batch=True)"

    # Eval mode must be a no-op.
    assert jnp.array_equal(transform_forward(x, key=k_t, training=False), x)

    print("KERNEL_OK")
</pallas_src>

<mosaic_0001>
module attributes {stable_mosaic.version = 11 : i64} {
  func.func @_masked_transform_kernel(%arg0: i32, %arg1: memref<2x1024xf32, #tpu.memory_space<vmem>>, %arg2: memref<2x1xi32, #tpu.memory_space<vmem>>, %arg3: memref<2x1024xf32, #tpu.memory_space<vmem>>) attributes {dimension_semantics = [#tpu.dimension_semantics<parallel>], iteration_bounds = array<i64: 1>, scalar_prefetch = 0 : i64, scratch_operands = 0 : i64, tpu.core_type = #tpu.core_type<tc>, window_params = [{transform_indices = @transform_0, window_bounds = array<i64: 2, 1024>}, {transform_indices = @transform_1, window_bounds = array<i64: 2, 1>}, {transform_indices = @transform_2, window_bounds = array<i64: 2, 1024>}]} {
    %c0 = arith.constant 0 : index
    %c0_0 = arith.constant 0 : index
    %0 = vector.load %arg1[%c0, %c0_0] : memref<2x1024xf32, #tpu.memory_space<vmem>>, vector<2x1024xf32>
    %c0_1 = arith.constant 0 : index
    %c0_2 = arith.constant 0 : index
    %1 = vector.load %arg2[%c0_1, %c0_2] : memref<2x1xi32, #tpu.memory_space<vmem>>, vector<2x1xi32>
    %c0_i32 = arith.constant 0 : i32
    %2 = vector.broadcast %c0_i32 : i32 to vector<2x1xi32>
    %3 = arith.cmpi ne, %1, %2 : vector<2x1xi32>
    %cst = arith.constant 0.000000e+00 : f32
    %4 = vector.broadcast %cst : f32 to vector<2x1024xf32>
    %5 = arith.subf %4, %0 : vector<2x1024xf32>
    %6 = vector.shape_cast %3 : vector<2x1xi1> to vector<2x1xi1>
    %7 = vector.broadcast %6 : vector<2x1xi1> to vector<2x1024xi1>
    %8 = arith.select %7, %5, %0 : vector<2x1024xi1>, vector<2x1024xf32>
    %c0_3 = arith.constant 0 : index
    %c0_4 = arith.constant 0 : index
    %9 = vector.load %arg3[%c0_3, %c0_4] : memref<2x1024xf32, #tpu.memory_space<vmem>>, vector<2x1024xf32>
    tpu.vector_store %arg3[%c0_3, %c0_4], %8 {strides = array<i32>} : memref<2x1024xf32, #tpu.memory_space<vmem>>, vector<2x1024xf32>,
    return
  }
  func.func @transform_0(%arg0: i32) -> (i32, i32) {
    %c0_i32 = arith.constant 0 : i32
    %c0_i32_0 = arith.constant 0 : i32
    return %arg0, %c0_i32 : i32, i32
  }
  func.func @transform_1(%arg0: i32) -> (i32, i32) {
    %c0_i32 = arith.constant 0 : i32
    %c0_i32_0 = arith.constant 0 : i32
    return %arg0, %c0_i32 : i32, i32
  }
  func.func @transform_2(%arg0: i32) -> (i32, i32) {
    %c0_i32 = arith.constant 0 : i32
    %c0_i32_0 = arith.constant 0 : i32
    return %arg0, %c0_i32 : i32, i32
  }
}

</mosaic_0001>

<llo_original>
// kernel: tpu_custom_call.1
$region0: #{tpu_custom_call.1}
  #allocation0 [shape = 'u32[]', space=smem, size = 0x4, offset = 0x4, fixed_abs, tag = 'smem constant byte address 0x4 - core index']
  #allocation1 [shape = 'u32[72,128]{1,0:T(1,128)}', space=vmem, size = 0x9000, scoped, tag = 'internal scratch']
  %s0 = inlined_call_operand.hbm [shape: f32[2,1024], index: 0, kind: input, shape index: {}]
  %s1 = inlined_call_operand.vmem [shape: s32[2,1], index: 1, kind: input, shape index: {}]
  %s2 = inlined_call_operand.hbm [shape: f32[2,1024], index: 2, kind: output, shape index: {}]
  %s3 = sld [smem:[#allocation0]]
  $region22: #{tpu_custom_call.1} parent=0
    _
  %s5 = ssub.s32 1, %s3
  %s6 = scalar_select 0, %s5, %s3
  $region1: #{tpu_custom_call.1} parent=0
    #allocation2 [shape = 'u8[8192]{0}', space=vmem, size = 0x2000, scoped, tag = 'input window, operand 0, single buffered']
    #allocation3 [shape = 's32[1]{0}', space=sflag, size = 0x4, scoped, tag = 'scoped memory for tpu_custom_call.1']
    #allocation4 [shape = 's32[1]{0}', space=sflag, size = 0x4, scoped, tag = 'scoped memory for tpu_custom_call.1']
    #allocation5 [shape = 'u8[8192]{0}', space=vmem, size = 0x2000, scoped, tag = 'output window, operand 0, single buffered']
    %7 = vsyncpa [#allocation3], 0
    %8 = vsyncpa [#allocation4], 0
    // Predicated region
    $region2: #{tpu_custom_call.1} parent=1 // pred_check
      _
    $region3: #{tpu_custom_call.1} parent=1 // pred_check_branch
      %10 = sbr.rel (0) target = $region5
    $region4: #{tpu_custom_call.1} parent=1 // pred_region
      %12 = vsyncadd [#allocation3], 0
      %s14 = sshll.u32 %s0, 4
      %s15 = int_to_ptr.hbm [resolvable:$true] %s14
      %s16 = sshll.u32 [#allocation2], 4
      %s17 = int_to_ptr.vmem [resolvable:$true] %s16
      %19 = dma.hbm_to_vmem [thread:$0]  %s15, 256, %s17, [#allocation3]
    $region5: #{tpu_custom_call.1} parent=1 // pred_fallthru
      _
    // Predicated region
    $region6: #{tpu_custom_call.1} parent=1 // pred_check
      _
    $region7: #{tpu_custom_call.1} parent=1 // pred_check_branch
      %21 = sbr.rel (0) target = $region9
    $region8: #{tpu_custom_call.1} parent=1 // pred_region
      _
    $region9: #{tpu_custom_call.1} parent=1 // pred_fallthru
      _
    // Predicated region
    $region10: #{tpu_custom_call.1} parent=1 // pred_check
      _
    $region11: #{tpu_custom_call.1} parent=1 // pred_check_branch
      %23 = sbr.rel (0) target = $region13
    $region12: #{tpu_custom_call.1} parent=1 // pred_region
      %25 = dma.done [#allocation3], 256
    $region13: #{tpu_custom_call.1} parent=1 // pred_fallthru
      _
    %v26 = vld [vmem:[#allocation2] sm:$0xff]
    %v27 = vld [vmem:[#allocation2 + $0x8] sm:$0xff]
    %v28 = vld [vmem:[%s1] sm:$0x3]
    %vm29 = vcmp.ne.s32.totalorder %v28, 0
    %v30 = vsub.f32 0.0, %v26
    %v31 = vsub.f32 0.0, %v27
    %v32 = vsel %vm29, 1, 0
    %33 = vset.pattern.permute.xlu0 0
    %34 = vperm.xlu0 %33, %v32
    %v35 = vpop.permute.xlu0 %34
    %vm36 = vcmp.eq.s32.totalorder %v35, 1
    %39 = vst [vmem:[#allocation1] ss:$4 sm:$0xff] %v30
    %s40 = scalar_lea.vmem [#allocation1], 32
    %41 = vst [vmem:[%s40] ss:$4 sm:$0xff] %v31
    %v42 = vld.sshfl [vmem:[#allocation1] sm:$0xff pattern:$0x73625140]
    %v43 = vld.sshfl [vmem:[#allocation1 + $0x8] sm:$0xff pattern:$0x73625140]
    %v44 = vld.sshfl [vmem:[#allocation1 + $0x10] sm:$0xff pattern:$0x73625140]
    %v45 = vld.sshfl [vmem:[#allocation1 + $0x18] sm:$0xff pattern:$0x73625140]
    %v46 = vld.sshfl [vmem:[#allocation1 + $0x20] sm:$0xff pattern:$0x73625140]
    %v47 = vld.sshfl [vmem:[#allocation1 + $0x28] sm:$0xff pattern:$0x73625140]
    %v48 = vld.sshfl [vmem:[#allocation1 + $0x30] sm:$0xff pattern:$0x73625140]
    %v49 = vld.sshfl [vmem:[#allocation1 + $0x38] sm:$0xff pattern:$0x73625140]
    %60 = vst [vmem:[#allocation1] ss:$4 sm:$0xff] %v26
    %s61 = scalar_lea.vmem [#allocation1], 32
    %62 = vst [vmem:[%s61] ss:$4 sm:$0xff] %v27
    %v63 = vld.sshfl [vmem:[#allocation1] sm:$0xff pattern:$0x73625140]
    %v64 = vld.sshfl [vmem:[#allocation1 + $0x8] sm:$0xff pattern:$0x73625140]
    %v65 = vld.sshfl [vmem:[#allocation1 + $0x10] sm:$0xff pattern:$0x73625140]
    %v66 = vld.sshfl [vmem:[#allocation1 + $0x18] sm:$0xff pattern:$0x73625140]
    %v67 = vld.sshfl [vmem:[#allocation1 + $0x20] sm:$0xff pattern:$0x73625140]
    %v68 = vld.sshfl [vmem:[#allocation1 + $0x28] sm:$0xff pattern:$0x73625140]
    %v69 = vld.sshfl [vmem:[#allocation1 + $0x30] sm:$0xff pattern:$0x73625140]
    %v70 = vld.sshfl [vmem:[#allocation1 + $0x38] sm:$0xff pattern:$0x73625140]
    %v79 = vsel %vm36, %v42, %v63
    %v80 = vsel %vm36, %v43, %v64
    %v81 = vsel %vm36, %v44, %v65
    %v82 = vsel %vm36, %v45, %v66
    %v83 = vsel %vm36, %v46, %v67
    %v84 = vsel %vm36, %v47, %v68
    %v85 = vsel %vm36, %v48, %v69
    %v86 = vsel %vm36, %v49, %v70
    %v95 = vrot.slane %v80, 6
    %v96 = vrot.slane %v81, 4
    %v97 = vrot.slane %v82, 2
    %v98 = vrot.slane %v84, 6
    %v99 = vrot.slane %v85, 4
    %v100 = vrot.slane %v86, 2
    %vm101 = vcmask 1041408
    %v102 = vsel %vm101, %v79, %v95
    %vm103 = vcmask 1045508
    %v104 = vsel %vm103, %v96, %v97
    %vm105 = vcmask 1043456
    %v106 = vsel %vm105, %v102, %v104
    %v107 = vsel %vm101, %v83, %v98
    %v108 = vsel %vm103, %v99, %v100
    %v109 = vsel %vm105, %v107, %v108
    %112 = vst [vmem:[#allocation5] sm:$0xff] %v106
    %113 = vst [vmem:[#allocation5 + $0x8] sm:$0xff] %v109
    // Predicated region
    $region14: #{tpu_custom_call.1} parent=1 // pred_check
      _
    $region15: #{tpu_custom_call.1} parent=1 // pred_check_branch
      %115 = sbr.rel (0) target = $region17
    $region16: #{tpu_custom_call.1} parent=1 // pred_region
      %117 = vsyncadd [#allocation4], 0
      %s119 = sshll.u32 [#allocation5], 4
      %s120 = int_to_ptr.vmem [resolvable:$true] %s119
      %s121 = sshll.u32 %s2, 4
      %s122 = int_to_ptr.hbm [resolvable:$true] %s121
      %124 = dma.vmem_to_hbm [thread:$0]  %s120, 256, %s122, [#allocation4]
    $region17: #{tpu_custom_call.1} parent=1 // pred_fallthru
      _
    // Predicated region
    $region18: #{tpu_custom_call.1} parent=1 // pred_check
      _
    $region19: #{tpu_custom_call.1} parent=1 // pred_check_branch
      %126 = sbr.rel (0) target = $region21
    $region20: #{tpu_custom_call.1} parent=1 // pred_region
      %128 = dma.done [#allocation4], 256
    $region21: #{tpu_custom_call.1} parent=1 // pred_fallthru
      _
    %129 = vsyncpa [#allocation3], 1
    %130 = vsyncpa [#allocation4], 1

</llo_original>
